<compile_context>
chip_gen: v5e
topology: v5e:2x2
jax: 0.10.0
libtpu: 0.0.40
codegen_flags: <defaults>
</compile_context>

<pallas_src>
import jax
import jax.numpy as jnp
from jax.experimental import pallas as pl
from jax.experimental.pallas import tpu as pltpu


def _fused_attention_kernel(date_ref, wT_ref, bias_ref, x_ref, o_ref, mask_sc):
    """date_ref: (B, D) f32 in SMEM; wT_ref: (D, TLW) f32; bias_ref: (1, TLW) f32;
    x_ref/o_ref: (TC, TLW) in x's dtype; mask_sc: (1, TLW) scratch in x's dtype."""
    bi = pl.program_id(0)          # batch          (outer, parallel)
    ci = pl.program_id(2)          # channel tile   (innermost, arbitrary)
    D = wT_ref.shape[0]

    # Recompute the (1, TLW) mask row only at the start of each channel sweep.
    @pl.when(ci == 0)
    def _compute_mask():
        def fma(k, acc):
            # scalar date[bi, k] (SMEM read) broadcast against one f32 weight row
            return acc + date_ref[bi, k] * wT_ref[pl.ds(k, 1), :]

        logits = bias_ref[...]                          # (1, TLW) f32
        if D <= 16:                                     # tiny input_dim: full unroll
            for k in range(D):
                logits = fma(k, logits)
        else:                                           # larger input_dim: rolled loop
            logits = jax.lax.fori_loop(0, D, fma, logits)
        mask_sc[...] = jax.nn.sigmoid(logits).astype(mask_sc.dtype)

    # Pure vld / vmul / vst stream; mask sublane-broadcast over the channel tile.
    o_ref[...] = x_ref[...] * mask_sc[...]


def _choose_tiles(B, C, LW, D, itemsize,
                  target_bytes=4 << 20,       # ~4 MiB x blocks: good on v7x, fine on v5e/v6e
                  max_block_bytes=8 << 20,    # hard cap on any single VMEM tile
                  min_split_bytes=512 << 10,  # don't split below this just to add grid steps
                  min_steps=8):               # enough steps for 2 TCs + pipeline warmup
    """Pick (channel_tile TC, lane_tile TLW) for x blocked as (TC, TLW)."""
    packing = max(8, 32 // max(1, itemsize))  # sublane rows/vreg: 8 f32, 16 bf16, 32 int8/fp8
    c_min = C if C % packing != 0 else packing
    d_pad = ((max(D, 1) + 7) // 8) * 8

    # Lane (flattened spatial) tile: full LW when affordable, else the largest
    # 128-multiple divisor whose minimal per-lane working set fits the cap.
    if LW % 128 == 0:
        lw_divs = [t for t in range(128, LW + 1, 128) if LW % t == 0]
    else:
        lw_divs = [LW]          # non-128-multiple spatial -> full extent (masked stores)
    per_lane = c_min * itemsize + (d_pad + 8) * 4 + 8 * itemsize  # x + wT + bias + mask scratch
    tlw = lw_divs[0]
    for t in lw_divs:
        if per_lane * t <= max_block_bytes:
            tlw = max(tlw, t)

    # Channel tile: largest packing-multiple divisor of C with a block <= target.
    if C % packing != 0:
        tc = C                  # only always-legal sublane block is the full extent
    else:
        tc = packing
        for c in range(packing, C + 1, packing):
            if C % c == 0 and c * tlw * itemsize <= target_bytes:
                tc = c

    # Guarantee enough grid steps for megacore sharding + DMA double buffering,
    # as long as blocks stay large enough that splitting is not pure overhead.
    def n_steps(tc_, tlw_):
        return B * (C // tc_) * (LW // tlw_)

    if C % packing == 0:
        while n_steps(tc, tlw) < min_steps:
            smaller = [c for c in range(packing, tc, packing)
                       if C % c == 0 and c * tlw * itemsize >= min_split_bytes]
            if not smaller:
                break
            tc = smaller[-1]
    while n_steps(tc, tlw) < min_steps:
        smaller = [t for t in lw_divs
                   if t < tlw and tc * t * itemsize >= min_split_bytes]
        if not smaller:
            break
        tlw = smaller[-1]

    return tc, tlw


def attention_block(date, x, w, b, output_shape):
    """date: (B, D); x: (B, C, L, W) NCHW; w: (L*W, D); b: (L*W,)."""
    L, W = output_shape
    B, D = date.shape
    _, C, Lx, Wx = x.shape
    assert (Lx, Wx) == (L, W)
    LW = L * W
    itemsize = x.dtype.itemsize

    x_flat = x.reshape(B, C, LW)                    # spatial flattened onto the lane axis
    wT = jnp.transpose(w).astype(jnp.float32)       # (D, LW): one-time layout change
    bias = b.reshape(1, LW).astype(jnp.float32)
    date32 = date.astype(jnp.float32)               # SMEM operand (32-bit words)

    TC, TLW = _choose_tiles(B, C, LW, D, itemsize)
    num_c = C // TC
    num_lw = LW // TLW
    # Channel tile is the fastest-varying grid axis: wT/bias/mask re-DMA/recompute
    # is elided across the inner sweep.  Do NOT reorder to put channels outermost.
    grid = (B, num_lw, num_c)

    # VMEM budget from the actual double-buffered working set (+ headroom).
    d_pad = ((D + 7) // 8) * 8
    xo_block = TC * TLW * itemsize
    w_block = d_pad * TLW * 4
    b_block = 8 * TLW * 4
    mask_scr = 8 * TLW * itemsize
    vmem_limit = int(4 * xo_block                   # x + o, double-buffered
                     + 2 * (w_block + b_block)      # small f32 side inputs, double-buffered
                     + mask_scr
                     + (2 << 20))                   # compiler headroom
    vmem_limit = max(vmem_limit, 4 << 20)

    out_flat = pl.pallas_call(
        _fused_attention_kernel,
        out_shape=jax.ShapeDtypeStruct((B, C, LW), x.dtype),
        grid=grid,
        in_specs=[
            # date: whole (B, D) table in SMEM; scalar-indexed inside the kernel.
            pl.BlockSpec(memory_space=pltpu.MemorySpace.SMEM),
            # wT: (D, TLW) lane tile; block index constant across the channel sweep.
            pl.BlockSpec((D, TLW), lambda bi, li, ci: (0, li)),
            # bias: (1, TLW) lane tile.
            pl.BlockSpec((1, TLW), lambda bi, li, ci: (0, li)),
            # x: lane-dense (TC, TLW) tile.
            pl.BlockSpec((pl.Squeezed(), TC, TLW), lambda bi, li, ci: (bi, ci, li)),
        ],
        out_specs=pl.BlockSpec((pl.Squeezed(), TC, TLW), lambda bi, li, ci: (bi, ci, li)),
        scratch_shapes=[pltpu.VMEM((1, TLW), x.dtype)],   # per-(batch, lane-tile) mask row
        compiler_params=pltpu.CompilerParams(
            dimension_semantics=("parallel", "parallel", "arbitrary"),
            vmem_limit_bytes=vmem_limit,
        ),
    )(date32, wT, bias, x_flat)

    return out_flat.reshape(B, C, L, W)


if __name__ == "__main__":
    # Small shapes consistent with the module's forward.
    B, C = 2, 4
    input_dim = 8
    output_shape = (16, 16)
    L, W = output_shape
    LW = L * W

    key = jax.random.PRNGKey(0)
    k_date, k_x, k_w, k_b = jax.random.split(key, 4)

    date = jax.random.normal(k_date, (B, input_dim), dtype=jnp.float32)
    x = jax.random.normal(k_x, (B, C, L, W), dtype=jnp.float32)

    # Deterministic fc params (shapes from nn.Linear(input_dim, L*W)).
    bound = 1.0 / (input_dim ** 0.5)
    fc_w = jax.random.uniform(k_w, (LW, input_dim), jnp.float32, -bound, bound)
    fc_b = jax.random.uniform(k_b, (LW,), jnp.float32, -bound, bound)

    out = attention_block(date, x, fc_w, fc_b, output_shape)
    out = jax.block_until_ready(out)

    # Pure-JAX reference: elementwise FMA in f32 (same math as the kernel's VPU
    # path, no matmul-precision ambiguity).
    logits_ref = jnp.sum(date[:, None, :] * fc_w[None, :, :], axis=-1) + fc_b
    mask_ref = jax.nn.sigmoid(logits_ref).reshape(B, 1, L, W)
    ref = x * mask_ref

    assert out.shape == ref.shape
    err = float(jnp.max(jnp.abs(out - ref)))
    # 1e-4 absolute: allows sub-ulp differences between Mosaic's and XLA's
    # sigmoid/exp lowering while still catching any real bug.
    assert err < 1e-4, f"max abs error {err}"

    print("KERNEL_OK")
</pallas_src>

<mosaic_0001>
module attributes {stable_mosaic.version = 11 : i64} {
  func.func @_fused_attention_kernel(%arg0: i32, %arg1: i32, %arg2: i32, %arg3: memref<2x8xf32, #tpu.memory_space<smem>>, %arg4: memref<8x256xf32, #tpu.memory_space<vmem>>, %arg5: memref<1x256xf32, #tpu.memory_space<vmem>>, %arg6: memref<1x4x256xf32, #tpu.memory_space<vmem>>, %arg7: memref<1x4x256xf32, #tpu.memory_space<vmem>>, %arg8: memref<1x256xf32, #tpu.memory_space<vmem>>) attributes {dimension_semantics = [#tpu.dimension_semantics<parallel>, #tpu.dimension_semantics<parallel>, #tpu.dimension_semantics<arbitrary>], iteration_bounds = array<i64: 2, 1, 1>, scalar_prefetch = 0 : i64, scratch_operands = 1 : i64, tpu.core_type = #tpu.core_type<tc>, window_params = [{transform_indices = @transform_0, window_bounds = array<i64: 2, 8>}, {transform_indices = @transform_1, window_bounds = array<i64: 8, 256>}, {transform_indices = @transform_2, window_bounds = array<i64: 1, 256>}, {transform_indices = @transform_3, window_bounds = array<i64: 1, 4, 256>}, {transform_indices = @transform_4, window_bounds = array<i64: 1, 4, 256>}]} {
    %c0_i32 = arith.constant 0 : i32
    %0 = arith.cmpi eq, %arg2, %c0_i32 : i32
    %1 = arith.extui %0 : i1 to i32
    %c0_i32_0 = arith.constant 0 : i32
    %2 = arith.cmpi ne, %1, %c0_i32_0 : i32
    scf.if %2 {
      %c0_8 = arith.constant 0 : index
      %c0_9 = arith.constant 0 : index
      %11 = vector.load %arg5[%c0_8, %c0_9] : memref<1x256xf32, #tpu.memory_space<vmem>>, vector<1x256xf32>
      %12 = arith.index_cast %arg0 : i32 to index
      %c0_10 = arith.constant 0 : index
      %13 = memref.load %arg3[%12, %c0_10] : memref<2x8xf32, #tpu.memory_space<smem>>
      %c0_11 = arith.constant 0 : index
      %c0_12 = arith.constant 0 : index
      %14 = vector.load %arg4[%c0_11, %c0_12] : memref<8x256xf32, #tpu.memory_space<vmem>>, vector<1x256xf32>
      %15 = vector.broadcast %13 : f32 to vector<1x256xf32>
      %16 = arith.mulf %15, %14 : vector<1x256xf32>
      %17 = arith.addf %11, %16 : vector<1x256xf32>
      %18 = arith.index_cast %arg0 : i32 to index
      %c1 = arith.constant 1 : index
      %19 = memref.load %arg3[%18, %c1] : memref<2x8xf32, #tpu.memory_space<smem>>
      %c1_13 = arith.constant 1 : index
      %c0_14 = arith.constant 0 : index
      %20 = vector.load %arg4[%c1_13, %c0_14] : memref<8x256xf32, #tpu.memory_space<vmem>>, vector<1x256xf32>
      %21 = vector.broadcast %19 : f32 to vector<1x256xf32>
      %22 = arith.mulf %21, %20 : vector<1x256xf32>
      %23 = arith.addf %17, %22 : vector<1x256xf32>
      %24 = arith.index_cast %arg0 : i32 to index
      %c2 = arith.constant 2 : index
      %25 = memref.load %arg3[%24, %c2] : memref<2x8xf32, #tpu.memory_space<smem>>
      %c2_15 = arith.constant 2 : index
      %c0_16 = arith.constant 0 : index
      %26 = vector.load %arg4[%c2_15, %c0_16] : memref<8x256xf32, #tpu.memory_space<vmem>>, vector<1x256xf32>
      %27 = vector.broadcast %25 : f32 to vector<1x256xf32>
      %28 = arith.mulf %27, %26 : vector<1x256xf32>
      %29 = arith.addf %23, %28 : vector<1x256xf32>
      %30 = arith.index_cast %arg0 : i32 to index
      %c3 = arith.constant 3 : index
      %31 = memref.load %arg3[%30, %c3] : memref<2x8xf32, #tpu.memory_space<smem>>
      %c3_17 = arith.constant 3 : index
      %c0_18 = arith.constant 0 : index
      %32 = vector.load %arg4[%c3_17, %c0_18] : memref<8x256xf32, #tpu.memory_space<vmem>>, vector<1x256xf32>
      %33 = vector.broadcast %31 : f32 to vector<1x256xf32>
      %34 = arith.mulf %33, %32 : vector<1x256xf32>
      %35 = arith.addf %29, %34 : vector<1x256xf32>
      %36 = arith.index_cast %arg0 : i32 to index
      %c4 = arith.constant 4 : index
      %37 = memref.load %arg3[%36, %c4] : memref<2x8xf32, #tpu.memory_space<smem>>
      %c4_19 = arith.constant 4 : index
      %c0_20 = arith.constant 0 : index
      %38 = vector.load %arg4[%c4_19, %c0_20] : memref<8x256xf32, #tpu.memory_space<vmem>>, vector<1x256xf32>
      %39 = vector.broadcast %37 : f32 to vector<1x256xf32>
      %40 = arith.mulf %39, %38 : vector<1x256xf32>
      %41 = arith.addf %35, %40 : vector<1x256xf32>
      %42 = arith.index_cast %arg0 : i32 to index
      %c5 = arith.constant 5 : index
      %43 = memref.load %arg3[%42, %c5] : memref<2x8xf32, #tpu.memory_space<smem>>
      %c5_21 = arith.constant 5 : index
      %c0_22 = arith.constant 0 : index
      %44 = vector.load %arg4[%c5_21, %c0_22] : memref<8x256xf32, #tpu.memory_space<vmem>>, vector<1x256xf32>
      %45 = vector.broadcast %43 : f32 to vector<1x256xf32>
      %46 = arith.mulf %45, %44 : vector<1x256xf32>
      %47 = arith.addf %41, %46 : vector<1x256xf32>
      %48 = arith.index_cast %arg0 : i32 to index
      %c6 = arith.constant 6 : index
      %49 = memref.load %arg3[%48, %c6] : memref<2x8xf32, #tpu.memory_space<smem>>
      %c6_23 = arith.constant 6 : index
      %c0_24 = arith.constant 0 : index
      %50 = vector.load %arg4[%c6_23, %c0_24] : memref<8x256xf32, #tpu.memory_space<vmem>>, vector<1x256xf32>
      %51 = vector.broadcast %49 : f32 to vector<1x256xf32>
      %52 = arith.mulf %51, %50 : vector<1x256xf32>
      %53 = arith.addf %47, %52 : vector<1x256xf32>
      %54 = arith.index_cast %arg0 : i32 to index
      %c7 = arith.constant 7 : index
      %55 = memref.load %arg3[%54, %c7] : memref<2x8xf32, #tpu.memory_space<smem>>
      %c7_25 = arith.constant 7 : index
      %c0_26 = arith.constant 0 : index
      %56 = vector.load %arg4[%c7_25, %c0_26] : memref<8x256xf32, #tpu.memory_space<vmem>>, vector<1x256xf32>
      %57 = vector.broadcast %55 : f32 to vector<1x256xf32>
      %58 = arith.mulf %57, %56 : vector<1x256xf32>
      %59 = arith.addf %53, %58 : vector<1x256xf32>
      %60 = arith.negf %59 : vector<1x256xf32>
      %61 = math.exp %60 : vector<1x256xf32>
      %cst = arith.constant 1.000000e+00 : f32
      %62 = vector.broadcast %cst : f32 to vector<1x256xf32>
      %63 = arith.addf %62, %61 : vector<1x256xf32>
      %64 = arith.divf %62, %63 : vector<1x256xf32>
      %c0_27 = arith.constant 0 : index
      %c0_28 = arith.constant 0 : index
      %65 = vector.load %arg8[%c0_27, %c0_28] : memref<1x256xf32, #tpu.memory_space<vmem>>, vector<1x256xf32>
      tpu.vector_store %arg8[%c0_27, %c0_28], %64 {strides = array<i32>} : memref<1x256xf32, #tpu.memory_space<vmem>>, vector<1x256xf32>,
    } else {
    }
    %c0 = arith.constant 0 : index
    %c0_1 = arith.constant 0 : index
    %c0_2 = arith.constant 0 : index
    %3 = vector.load %arg6[%c0, %c0_1, %c0_2] : memref<1x4x256xf32, #tpu.memory_space<vmem>>, vector<1x4x256xf32>
    %4 = vector.shape_cast %3 : vector<1x4x256xf32> to vector<4x256xf32>
    %c0_3 = arith.constant 0 : index
    %c0_4 = arith.constant 0 : index
    %5 = vector.load %arg8[%c0_3, %c0_4] : memref<1x256xf32, #tpu.memory_space<vmem>>, vector<1x256xf32>
    %6 = vector.broadcast %5 : vector<1x256xf32> to vector<4x256xf32>
    %7 = arith.mulf %4, %6 : vector<4x256xf32>
    %c0_5 = arith.constant 0 : index
    %c0_6 = arith.constant 0 : index
    %c0_7 = arith.constant 0 : index
    %8 = vector.load %arg7[%c0_5, %c0_6, %c0_7] : memref<1x4x256xf32, #tpu.memory_space<vmem>>, vector<1x4x256xf32>
    %9 = vector.shape_cast %8 : vector<1x4x256xf32> to vector<4x256xf32>
    %10 = vector.shape_cast %7 : vector<4x256xf32> to vector<1x4x256xf32>
    tpu.vector_store %arg7[%c0_5, %c0_6, %c0_7], %10 {strides = array<i32>} : memref<1x4x256xf32, #tpu.memory_space<vmem>>, vector<1x4x256xf32>,
    return
  }
  func.func @transform_0(%arg0: i32, %arg1: i32, %arg2: i32) -> (i32, i32) {
    %c0_i32 = arith.constant 0 : i32
    %c0_i32_0 = arith.constant 0 : i32
    %c0_i32_1 = arith.constant 0 : i32
    return %c0_i32, %c0_i32_0 : i32, i32
  }
  func.func @transform_1(%arg0: i32, %arg1: i32, %arg2: i32) -> (i32, i32) {
    %c0_i32 = arith.constant 0 : i32
    %c0_i32_0 = arith.constant 0 : i32
    return %c0_i32, %arg1 : i32, i32
  }
  func.func @transform_2(%arg0: i32, %arg1: i32, %arg2: i32) -> (i32, i32) {
    %c0_i32 = arith.constant 0 : i32
    %c0_i32_0 = arith.constant 0 : i32
    return %c0_i32, %arg1 : i32, i32
  }
  func.func @transform_3(%arg0: i32, %arg1: i32, %arg2: i32) -> (i32, i32, i32) {
    %c0_i32 = arith.constant 0 : i32
    return %arg0, %arg2, %arg1 : i32, i32, i32
  }
  func.func @transform_4(%arg0: i32, %arg1: i32, %arg2: i32) -> (i32, i32, i32) {
    %c0_i32 = arith.constant 0 : i32
    return %arg0, %arg2, %arg1 : i32, i32, i32
  }
}

</mosaic_0001>

<llo_original>
// kernel: tpu_custom_call.1
$region0: #{tpu_custom_call.1}
  #allocation0 [shape = 'u32[]', space=smem, size = 0x4, offset = 0x4, fixed_abs, tag = 'smem constant byte address 0x4 - core index']
  #allocation1 [shape = 'u32[72,128]{1,0:T(1,128)}', space=vmem, size = 0x9000, scoped, tag = 'internal scratch']
  #allocation2 [shape = 'f32[1,256]{1,0:T(1,128)}', space=vmem, size = 0x400, scoped, tag = 'scratch operand']
  %s0 = inlined_call_operand.hbm [shape: f32[2,8], index: 0, kind: input, shape index: {}]
  %s1 = inlined_call_operand.hbm [shape: f32[8,256], index: 1, kind: input, shape index: {}]
  %s2 = inlined_call_operand.hbm [shape: f32[1,256], index: 2, kind: input, shape index: {}]
  %s3 = inlined_call_operand.hbm [shape: f32[2,4,256], index: 3, kind: input, shape index: {}]
  %s4 = inlined_call_operand.hbm [shape: f32[2,4,256], index: 4, kind: output, shape index: {}]
  %s5 = sld [smem:[#allocation0]]
  $region69: #{tpu_custom_call.1} parent=0
    _
  %s7 = ssub.s32 1, %s5
  %s8 = scalar_select 0, %s7, %s5
  $region1: #{tpu_custom_call.1} parent=0
    #allocation3 [shape = 'u8[1024]{0}', space=smem, size = 0x400, scoped, tag = 'input window, operand 0, single buffered']
    #allocation4 [shape = 's32[2]{0}', space=sflag, size = 0x8, scoped, tag = 'scoped memory for tpu_custom_call.1']
    #allocation5 [shape = 's32[2]{0}', space=sflag, size = 0x8, scoped, tag = 'scoped memory for tpu_custom_call.1']
    #allocation6 [shape = 's32[2]{0}', space=sflag, size = 0x8, scoped, tag = 'scoped memory for tpu_custom_call.1']
    #allocation7 [shape = 'u8[8192]{0}', space=vmem, size = 0x2000, scoped, tag = 'input window, operand 1, single buffered']
    #allocation8 [shape = 'u8[1024]{0}', space=vmem, size = 0x400, scoped, tag = 'input window, operand 2, single buffered']
    #allocation9 [shape = 's32[1]{0}', space=sflag, size = 0x4, scoped, tag = 'scoped memory for tpu_custom_call.1']
    #allocation10 [shape = 'u8[8192]{0}', space=vmem, size = 0x2000, scoped, tag = 'input window, operand 3']
    #allocation11 [shape = 'u8[8192]{0}', space=vmem, size = 0x2000, scoped, tag = 'output window, operand 0']
    %9 = vsyncpa [#allocation6], 0
    %10 = vsyncpa [#allocation4], 0
    %11 = vsyncpa [#allocation9], 0
    %12 = vsyncpa [#allocation5], 0
    %s13 = scalar_lea.sflag [#allocation5], 1
    %14 = vsyncpa %s13, 0
    loop: start=0, step=1, limit=4
    $region2: #{tpu_custom_call.1} parent=1 // loop_pre_header
      _
    $region3: #{tpu_custom_call.1} parent=1 // loop_header
      %s16 = sphi 0, %s20
      %p17 = scmp.ge.s32.totalorder %s16, 4
      %s23 = sphi 0, %s42
      %s24 = sphi 0, %s38
      %s25 = sphi 0, %s34
      %s26 = sphi 0, %s23
      %s27 = sphi 0, %s24
      %s28 = sphi 0, %s25
      %s29 = sphi 0, %s26
      %s30 = sphi 0, %s27
      %s31 = sphi 0, %s28
      %s43 = sphi 0, %s43
      %s45 = sphi 0, %s43
      %s46 = sphi 0, %s45
      %s60 = sphi 0, %s46
      %s66 = sphi 0, %s68
      %s69 = sphi 0, %s66
      %s70 = sphi 0, %s69
      %s86 = sphi 0, %s70
      %s92 = sphi 0, %s94
      %s95 = sphi 0, %s92
      %s96 = sphi 0, %s95
      %s112 = sphi 0, %s96
      %s122 = sphi 0, %s124
      %s125 = sphi 0, %s122
      %s126 = sphi 0, %s125
      %s142 = sphi 0, %s126
      %s152 = sphi 0, %s154
      %s155 = sphi 0, %s152
      %s156 = sphi 0, %s155
      %s172 = sphi 0, %s156
    $region4: #{tpu_custom_call.1} parent=1 // loop_header_branch
      %19 = sbr.rel (%p17) target = $region8
    $region5: #{tpu_custom_call.1} parent=1 // loop_body
      %s21 = ssub.s32 %s16, 1
      %s22 = ssub.s32 %s16, 2
      %s32 = sadd.s32 1, %s25
      %p33 = scmp.ge.s32.totalorder %s32, 1
      %s34 = scalar_select %p33, 0, %s32
      %s35 = sadd.s32 1, %s24
      %s36 = scalar_select %p33, %s35, %s24
      %p37 = scmp.ge.s32.totalorder %s36, 1
      %s38 = scalar_select %p37, 0, %s36
      %s39 = sadd.s32 1, %s23
      %s40 = scalar_select %p37, %s39, %s23
      %p41 = scmp.ge.s32.totalorder %s40, 2
      %s42 = scalar_select %p41, 0, %s40
      %s44 = sadd.s32 %s43, 1
      %p47 = scmp.eq.s32.totalorder %s16, 1
      %p48 = scmp.ne.s32.totalorder %s43, %s45
      %p49 = scmp.eq.s32.totalorder %s16, 0
      %p50 = por %p48, %p49
      %p51 = scmp.ne.s32.totalorder %s43, %s45
      %p52 = scmp.eq.s32.totalorder %s21, 1
      %p53 = por %p51, %p52
      %p54 = scmp.ne.s32.totalorder %s45, %s46
      %p55 = scmp.eq.s32.totalorder %s21, 0
      %p56 = por %p54, %p55
      %p57 = scmp.ne.s32.totalorder %s45, %s46
      %p58 = scmp.eq.s32.totalorder %s22, 1
      %p59 = por %p57, %p58
      %p61 = scmp.ne.s32.totalorder %s46, %s60
      %p62 = scmp.eq.s32.totalorder %s22, 0
      %p63 = por %p61, %p62
      %s64 = ssub.s32 %s24, %s38
      %p65 = scmp.eq.s32.totalorder %s64, 0
      %s67 = sadd.s32 %s66, 1
      %s68 = scalar_select %p65, %s66, %s67
      %p71 = pneg %p65
      %p72 = scmp.eq.s32.totalorder %s16, 1
      %p73 = por %p71, %p72
      %p74 = scmp.ne.s32.totalorder %s66, %s69
      %p75 = scmp.eq.s32.totalorder %s16, 0
      %p76 = por %p74, %p75
      %p77 = scmp.ne.s32.totalorder %s66, %s69
      %p78 = scmp.eq.s32.totalorder %s21, 1
      %p79 = por %p77, %p78
      %p80 = scmp.ne.s32.totalorder %s69, %s70
      %p81 = scmp.eq.s32.totalorder %s21, 0
      %p82 = por %p80, %p81
      %p83 = scmp.ne.s32.totalorder %s69, %s70
      %p84 = scmp.eq.s32.totalorder %s22, 1
      %p85 = por %p83, %p84
      %p87 = scmp.ne.s32.totalorder %s70, %s86
      %p88 = scmp.eq.s32.totalorder %s22, 0
      %p89 = por %p87, %p88
      %s90 = ssub.s32 %s24, %s38
      %p91 = scmp.eq.s32.totalorder %s90, 0
      %s93 = sadd.s32 %s92, 1
      %s94 = scalar_select %p91, %s92, %s93
      %p97 = pneg %p91
      %p98 = scmp.eq.s32.totalorder %s16, 1
      %p99 = por %p97, %p98
      %p100 = scmp.ne.s32.totalorder %s92, %s95
      %p101 = scmp.eq.s32.totalorder %s16, 0
      %p102 = por %p100, %p101
      %p103 = scmp.ne.s32.totalorder %s92, %s95
      %p104 = scmp.eq.s32.totalorder %s21, 1
      %p105 = por %p103, %p104
      %p106 = scmp.ne.s32.totalorder %s95, %s96
      %p107 = scmp.eq.s32.totalorder %s21, 0
      %p108 = por %p106, %p107
      %p109 = scmp.ne.s32.totalorder %s95, %s96
      %p110 = scmp.eq.s32.totalorder %s22, 1
      %p111 = por %p109, %p110
      %p113 = scmp.ne.s32.totalorder %s96, %s112
      %p114 = scmp.eq.s32.totalorder %s22, 0
      %p115 = por %p113, %p114
      %s116 = ssub.s32 %s23, %s42
      %s117 = ssub.s32 %s25, %s34
      %s118 = sor.u32 %s116, %s117
      %s119 = ssub.s32 %s24, %s38
      %s120 = sor.u32 %s118, %s119
      %p121 = scmp.eq.s32.totalorder %s120, 0
      %s123 = sadd.s32 %s122, 1
      %s124 = scalar_select %p121, %s122, %s123
      %p127 = pneg %p121
      %p128 = scmp.eq.s32.totalorder %s16, 1
      %p129 = por %p127, %p128
      %p130 = scmp.ne.s32.totalorder %s122, %s125
      %p131 = scmp.eq.s32.totalorder %s16, 0
      %p132 = por %p130, %p131
      %p133 = scmp.ne.s32.totalorder %s122, %s125
      %p134 = scmp.eq.s32.totalorder %s21, 1
      %p135 = por %p133, %p134
      %p136 = scmp.ne.s32.totalorder %s125, %s126
      %p137 = scmp.eq.s32.totalorder %s21, 0
      %p138 = por %p136, %p137
      %p139 = scmp.ne.s32.totalorder %s125, %s126
      %p140 = scmp.eq.s32.totalorder %s22, 1
      %p141 = por %p139, %p140
      %p143 = scmp.ne.s32.totalorder %s126, %s142
      %p144 = scmp.eq.s32.totalorder %s22, 0
      %p145 = por %p143, %p144
      %s146 = ssub.s32 %s23, %s42
      %s147 = ssub.s32 %s25, %s34
      %s148 = sor.u32 %s146, %s147
      %s149 = ssub.s32 %s24, %s38
      %s150 = sor.u32 %s148, %s149
      %p151 = scmp.eq.s32.totalorder %s150, 0
      %s153 = sadd.s32 %s152, 1
      %s154 = scalar_select %p151, %s152, %s153
      %p157 = pneg %p151
      %p158 = scmp.eq.s32.totalorder %s16, 1
      %p159 = por %p157, %p158
      %p160 = scmp.ne.s32.totalorder %s152, %s155
      %p161 = scmp.eq.s32.totalorder %s16, 0
      %p162 = por %p160, %p161
      %p163 = scmp.ne.s32.totalorder %s152, %s155
      %p164 = scmp.eq.s32.totalorder %s21, 1
      %p165 = por %p163, %p164
      %p166 = scmp.ne.s32.totalorder %s155, %s156
      %p167 = scmp.eq.s32.totalorder %s21, 0
      %p168 = por %p166, %p167
      %p169 = scmp.ne.s32.totalorder %s155, %s156
      %p170 = scmp.eq.s32.totalorder %s22, 1
      %p171 = por %p169, %p170
      %p173 = scmp.ne.s32.totalorder %s156, %s172
      %p174 = scmp.eq.s32.totalorder %s22, 0
      %p175 = por %p173, %p174
      %p176 = scmp.le.s32.totalorder 1, %s16
      %p177 = scmp.lt.s32.totalorder %s16, 3
      %p178 = pnand %p176, %p177
      %p179 = pneg %p178
      // Predicated region
      $region9: #{tpu_custom_call.1} parent=5 // pred_check
        _
      $region10: #{tpu_custom_call.1} parent=5 // pred_check_branch
        %181 = sbr.rel (%p178) target = $region12
      $region11: #{tpu_custom_call.1} parent=5 // pred_region
        %s182 = ssub.s32 %s16, 1
        // Predicated region
        $region13: #{tpu_custom_call.1} parent=11 // pred_check
          %p183 = pneg %p56
        $region14: #{tpu_custom_call.1} parent=11 // pred_check_branch
          %185 = sbr.rel (%p183) target = $region16
        $region15: #{tpu_custom_call.1} parent=11 // pred_region
          %187 = vsyncadd [#allocation6], 0
          %s189 = sshll.u32 %s0, 4
          %s190 = int_to_ptr.hbm [resolvable:$true] %s189
          %192 = dma.hbm_to_smem %s190, 32, [#allocation3], [#allocation6]
        $region16: #{tpu_custom_call.1} parent=11 // pred_fallthru
          _
        // Predicated region
        $region17: #{tpu_custom_call.1} parent=11 // pred_check
          %p193 = pneg %p82
        $region18: #{tpu_custom_call.1} parent=11 // pred_check_branch
          %195 = sbr.rel (%p193) target = $region20
        $region19: #{tpu_custom_call.1} parent=11 // pred_region
          %s196 = smul.u32 2, %s27
          %198 = vsyncadd [#allocation4], 0
          %s199 = smul.addr %s196, 8
          %s200 = scalar_lea.hbm %s1, %s199
          %s202 = sshll.u32 %s200, 4
          %s203 = int_to_ptr.hbm [resolvable:$true] %s202
          %s204 = sshll.u32 [#allocation7], 4
          %s205 = int_to_ptr.vmem [resolvable:$true] %s204
          %207 = dma.hbm_to_vmem [thread:$0]  %s203, 256, %s205, [#allocation4]
        $region20: #{tpu_custom_call.1} parent=11 // pred_fallthru
          _
        // Predicated region
        $region21: #{tpu_custom_call.1} parent=11 // pred_check
          %p208 = pneg %p108
        $region22: #{tpu_custom_call.1} parent=11 // pred_check_branch
          %210 = sbr.rel (%p208) target = $region24
        $region23: #{tpu_custom_call.1} parent=11 // pred_region
          %s211 = smul.u32 2, %s27
          %213 = vsyncadd [#allocation9], 0
          %s214 = scalar_lea.hbm %s2, %s211
          %s216 = sshll.u32 %s214, 4
          %s217 = int_to_ptr.hbm [resolvable:$true] %s216
          %s218 = sshll.u32 [#allocation8], 4
          %s219 = int_to_ptr.vmem [resolvable:$true] %s218
          %221 = dma.hbm_to_vmem [thread:$0]  %s217, 32, %s219, [#allocation9]
        $region24: #{tpu_custom_call.1} parent=11 // pred_fallthru
          _
      $region12: #{tpu_custom_call.1} parent=5 // pred_fallthru
        _
      %p222 = scmp.lt.s32.totalorder %s16, 2
      // Predicated region
      $region25: #{tpu_custom_call.1} parent=5 // pred_check
        %p223 = pneg %p222
      $region26: #{tpu_custom_call.1} parent=5 // pred_check_branch
        %225 = sbr.rel (%p223) target = $region28
      $region27: #{tpu_custom_call.1} parent=5 // pred_region
        // Predicated region
        $region29: #{tpu_custom_call.1} parent=27 // pred_check
          %p226 = pneg %p132
        $region30: #{tpu_custom_call.1} parent=27 // pred_check_branch
          %228 = sbr.rel (%p226) target = $region32
        $region31: #{tpu_custom_call.1} parent=27 // pred_region
          %s229 = sand.u32 %s16, 1
          %s230 = scalar_lea.sflag [#allocation4], %s229
          %s231 = sand.u32 %s122, 1
          %s232 = smul.addr %s231, 8
          %s233 = scalar_lea.vmem [#allocation10], %s232
          %s234 = smul.u32 2, %s24
          %236 = vsyncadd %s230, 0
          %s237 = smul.addr %s25, 2
          %s238 = sadd.s32 %s234, %s237
          %s239 = smul.addr %s23, 2
          %s240 = sadd.s32 %s238, %s239
          %s241 = smul.addr %s240, 4
          %s242 = scalar_lea.hbm %s3, %s241
          %s244 = sshll.u32 %s242, 4
          %s245 = int_to_ptr.hbm [resolvable:$true] %s244
          %s246 = sshll.u32 %s233, 4
          %s247 = int_to_ptr.vmem [resolvable:$true] %s246
          %249 = dma.hbm_to_vmem [thread:$0]  %s245, 128, %s247, %s230
        $region32: #{tpu_custom_call.1} parent=27 // pred_fallthru
          _
      $region28: #{tpu_custom_call.1} parent=5 // pred_fallthru
        _
      %p250 = scmp.le.s32.totalorder 1, %s16
      %p251 = scmp.lt.s32.totalorder %s16, 3
      %p252 = pnand %p250, %p251
      %p253 = pneg %p252
      // Predicated region
      $region33: #{tpu_custom_call.1} parent=5 // pred_check
        _
      $region34: #{tpu_custom_call.1} parent=5 // pred_check_branch
        %255 = sbr.rel (%p252) target = $region36
      $region35: #{tpu_custom_call.1} parent=5 // pred_region
        %s256 = ssub.s32 %s16, 1
        // Predicated region
        $region37: #{tpu_custom_call.1} parent=35 // pred_check
          %p257 = pneg %p56
        $region38: #{tpu_custom_call.1} parent=35 // pred_check_branch
          %259 = sbr.rel (%p257) target = $region40
        $region39: #{tpu_custom_call.1} parent=35 // pred_region
          %261 = dma.done [#allocation6], 32
        $region40: #{tpu_custom_call.1} parent=35 // pred_fallthru
          _
        // Predicated region
        $region41: #{tpu_custom_call.1} parent=35 // pred_check
          %p262 = pneg %p82
        $region42: #{tpu_custom_call.1} parent=35 // pred_check_branch
          %264 = sbr.rel (%p262) target = $region44
        $region43: #{tpu_custom_call.1} parent=35 // pred_region
          %266 = dma.done [#allocation4], 256
        $region44: #{tpu_custom_call.1} parent=35 // pred_fallthru
          _
        // Predicated region
        $region45: #{tpu_custom_call.1} parent=35 // pred_check
          %p267 = pneg %p108
        $region46: #{tpu_custom_call.1} parent=35 // pred_check_branch
          %269 = sbr.rel (%p267) target = $region48
        $region47: #{tpu_custom_call.1} parent=35 // pred_region
          %271 = dma.done [#allocation9], 32
        $region48: #{tpu_custom_call.1} parent=35 // pred_fallthru
          _
        %s272 = sand.u32 %s21, 1
        %s273 = scalar_lea.sflag [#allocation4], %s272
        %s274 = sand.u32 %s125, 1
        %s275 = smul.addr %s274, 8
        %s276 = scalar_lea.vmem [#allocation10], %s275
        // Predicated region
        $region49: #{tpu_custom_call.1} parent=35 // pred_check
          %p277 = pneg %p138
        $region50: #{tpu_custom_call.1} parent=35 // pred_check_branch
          %279 = sbr.rel (%p277) target = $region52
        $region51: #{tpu_custom_call.1} parent=35 // pred_region
          %281 = dma.done %s273, 128
        $region52: #{tpu_custom_call.1} parent=35 // pred_fallthru
          _
        %282 = sfence
        %p283 = pneg %p56
        %p284 = pneg %p53
        %p285 = pneg %p82
        %p286 = pneg %p79
        %p287 = pneg %p108
        %p288 = pneg %p105
        %s289 = sand.u32 %s21, 1
        %s290 = scalar_lea.sflag [#allocation4], %s289
        %s291 = sand.u32 %s125, 1
        %s292 = smul.addr %s291, 8
        %s293 = scalar_lea.vmem [#allocation10], %s292
        %p294 = pneg %p138
        %p295 = pneg %p135
        %p296 = pneg %p168
        %p297 = pneg %p165
        %s298 = sand.u32 %s155, 1
        %s299 = scalar_lea.sflag [#allocation5], %s298
        %s300 = sand.u32 %s155, 1
        %s301 = smul.addr %s300, 8
        %s302 = scalar_lea.vmem [#allocation11], %s301
        %s303 = smul.u32 2, %s27
        %s304 = smul.u32 2, %s27
        %s305 = smul.u32 2, %s27
        %s306 = smul.u32 2, %s27
        %p307 = scmp.eq.s32.totalorder %s28, 0
        // Predicated region
        $region53: #{tpu_custom_call.1} parent=35 // pred_check
          %p308 = pneg %p307
        $region54: #{tpu_custom_call.1} parent=35 // pred_check_branch
          %310 = sbr.rel (%p308) target = $region56
        $region55: #{tpu_custom_call.1} parent=35 // pred_region
          %v311 = vld [vmem:[#allocation8] sm:$0x3]
          %s312 = smul.u32 %s26, 128
          %s313 = sld [smem:[#allocation3 + %s312]]
          %v314 = vld [vmem:[#allocation7] ss:$8 sm:$0x3]
          %v315 = vstv %s313
          %v316 = vmul.f32 %v315, %v314
          %v317 = vadd.f32 %v311, %v316
          %s318 = sadd.s32 %s312, 1
          %s319 = sld [smem:[#allocation3 + %s318]]
          %s320 = scalar_lea.vmem [#allocation7], 1
          %v321 = vld [vmem:[%s320] ss:$8 sm:$0x3]
          %v322 = vstv %s319
          %v323 = vmul.f32 %v322, %v321
          %v324 = vadd.f32 %v317, %v323
          %s325 = sadd.s32 %s312, 2
          %s326 = sld [smem:[#allocation3 + %s325]]
          %s327 = scalar_lea.vmem [#allocation7], 2
          %v328 = vld [vmem:[%s327] ss:$8 sm:$0x3]
          %v329 = vstv %s326
          %v330 = vmul.f32 %v329, %v328
          %v331 = vadd.f32 %v324, %v330
          %s332 = sadd.s32 %s312, 3
          %s333 = sld [smem:[#allocation3 + %s332]]
          %s334 = scalar_lea.vmem [#allocation7], 3
          %v335 = vld [vmem:[%s334] ss:$8 sm:$0x3]
          %v336 = vstv %s333
          %v337 = vmul.f32 %v336, %v335
          %v338 = vadd.f32 %v331, %v337
          %s339 = sadd.s32 %s312, 4
          %s340 = sld [smem:[#allocation3 + %s339]]
          %s341 = scalar_lea.vmem [#allocation7], 4
          %v342 = vld [vmem:[%s341] ss:$8 sm:$0x3]
          %v343 = vstv %s340
          %v344 = vmul.f32 %v343, %v342
          %v345 = vadd.f32 %v338, %v344
          %s346 = sadd.s32 %s312, 5
          %s347 = sld [smem:[#allocation3 + %s346]]
          %s348 = scalar_lea.vmem [#allocation7], 5
          %v349 = vld [vmem:[%s348] ss:$8 sm:$0x3]
          %v350 = vstv %s347
          %v351 = vmul.f32 %v350, %v349
          %v352 = vadd.f32 %v345, %v351
          %s353 = sadd.s32 %s312, 6
          %s354 = sld [smem:[#allocation3 + %s353]]
          %s355 = scalar_lea.vmem [#allocation7], 6
          %v356 = vld [vmem:[%s355] ss:$8 sm:$0x3]
          %v357 = vstv %s354
          %v358 = vmul.f32 %v357, %v356
          %v359 = vadd.f32 %v352, %v358
          %s360 = sadd.s32 %s312, 7
          %s361 = sld [smem:[#allocation3 + %s360]]
          %s362 = scalar_lea.vmem [#allocation7], 7
          %v363 = vld [vmem:[%s362] ss:$8 sm:$0x3]
          %v364 = vstv %s361
          %v365 = vmul.f32 %v364, %v363
          %v366 = vadd.f32 %v359, %v365
          %v367 = vxor.u32 %v366, 2147483648
          %v368 = vmul.f32 %v367, 1.442695
          %v369 = vpow.pop %v368
          %v370 = vadd.f32 %v369, 1.0
          %v371 = vrcp.pop %v370
          %v372 = vmul.f32 %v370, %v371
          %v373 = vsub.f32 1.0, %v372
          %v374 = vmul.f32 %v371, %v373
          %v375 = vadd.f32 %v371, %v374
          %vm376 = vweird.f32 %v370
          %vm377 = vweird.f32 %v371
          %vm378 = vmor %vm376, %vm377
          %v379 = vsel %vm378, %v371, %v375
          %v380 = vand.u32 2147483647, %v370
          %vm381 = vcmp.eq.f32.partialorder %v380, 8.507059e+37
          %v382 = vand.u32 %v370, 2147483648
          %v383 = vor.u32 1.1754944e-38, %v382
          %v384 = vsel %vm381, %v383, %v379
          %v385 = vmul.f32 1.0, %v384
          %v386 = vlaneseq
          %vm387 = vcmp.ge.s32.totalorder %v386, 0
          %vm388 = vcmp.lt.s32.totalorder %v386, 256
          %vm389 = vmand %vm387, %vm388
          %390 = vst.msk [vmem:[#allocation2] sm:$0x3] %vm389, %v385
        $region56: #{tpu_custom_call.1} parent=35 // pred_fallthru
          _
        %v391 = vld [vmem:[%s276] sm:$0xff]
        %v392 = vld [vmem:[#allocation2] sm:$0x3]
        %v394 = vperm.slane %v392, 0
        %v395 = vperm.slane %v392, 1
        %v396 = vrot.slane %v395, 4
        %vm397 = vcmask 1043456
        %v398 = vsel %vm397, %v394, %v396
        %v400 = vmul.f32 %v391, %v398
        %401 = vst [vmem:[%s302] sm:$0xff] %v400
        %s402 = sand.u32 %s155, 1
        %s403 = scalar_lea.sflag [#allocation5], %s402
        %s404 = sand.u32 %s155, 1
        %s405 = smul.addr %s404, 8
        %s406 = scalar_lea.vmem [#allocation11], %s405
        // Predicated region
        $region57: #{tpu_custom_call.1} parent=35 // pred_check
          %p407 = pneg %p165
        $region58: #{tpu_custom_call.1} parent=35 // pred_check_branch
          %409 = sbr.rel (%p407) target = $region60
        $region59: #{tpu_custom_call.1} parent=35 // pred_region
          %s410 = smul.u32 2, %s27
          %412 = vsyncadd %s403, 0
          %s413 = smul.addr %s28, 2
          %s414 = sadd.s32 %s410, %s413
          %s415 = smul.addr %s26, 2
          %s416 = sadd.s32 %s414, %s415
          %s417 = smul.addr %s416, 4
          %s418 = scalar_lea.hbm %s4, %s417
          %s420 = sshll.u32 %s406, 4
          %s421 = int_to_ptr.vmem [resolvable:$true] %s420
          %s422 = sshll.u32 %s418, 4
          %s423 = int_to_ptr.hbm [resolvable:$true] %s422
          %425 = dma.vmem_to_hbm [thread:$0]  %s421, 128, %s423, %s403
        $region60: #{tpu_custom_call.1} parent=35 // pred_fallthru
          _
      $region36: #{tpu_custom_call.1} parent=5 // pred_fallthru
        _
      %p426 = scmp.le.s32.totalorder 2, %s16
      // Predicated region
      $region61: #{tpu_custom_call.1} parent=5 // pred_check
        %p427 = pneg %p426
      $region62: #{tpu_custom_call.1} parent=5 // pred_check_branch
        %429 = sbr.rel (%p427) target = $region64
      $region63: #{tpu_custom_call.1} parent=5 // pred_region
        %s430 = ssub.s32 %s16, 2
        // Predicated region
        $region65: #{tpu_custom_call.1} parent=63 // pred_check
          %p431 = pneg %p171
        $region66: #{tpu_custom_call.1} parent=63 // pred_check_branch
          %433 = sbr.rel (%p431) target = $region68
        $region67: #{tpu_custom_call.1} parent=63 // pred_region
          %s434 = sand.u32 %s156, 1
          %s435 = scalar_lea.sflag [#allocation5], %s434
          %s436 = sand.u32 %s156, 1
          %s437 = smul.addr %s436, 8
          %s438 = scalar_lea.vmem [#allocation11], %s437
          %440 = dma.done %s435, 128
        $region68: #{tpu_custom_call.1} parent=63 // pred_fallthru
          _
      $region64: #{tpu_custom_call.1} parent=5 // pred_fallthru
        _
    $region6: #{tpu_custom_call.1} parent=1 // loop_footer
      %s20 = sadd.s32 1, %s16
    $region7: #{tpu_custom_call.1} parent=1 // loop_footer_branch
      %15 = sbr.rel target = $region3
    $region8: #{tpu_custom_call.1} parent=1 // loop_exit
      _
    %441 = vsyncpa [#allocation4], 1
    %s442 = scalar_lea.sflag [#allocation4], 1
    %443 = vsyncpa %s442, 1
    %444 = vsyncpa [#allocation9], 1
    %445 = vsyncpa [#allocation5], 1
    %s446 = scalar_lea.sflag [#allocation5], 1
    %447 = vsyncpa %s446, 1
    %448 = vsyncpa [#allocation6], 1
    %s449 = scalar_lea.sflag [#allocation6], 1
    %450 = vsyncpa %s449, 1

</llo_original>
